<compile_context>
chip_gen: v7x
topology: tpu7x:2x2x1
jax: 0.10.0
libtpu: 0.0.40
codegen_flags: <defaults>
</compile_context>

<pallas_src>
import jax
import jax.numpy as jnp
from jax.experimental import pallas as pl
from jax.experimental.pallas import tpu as pltpu

HIDDEN = 256
EPS = 1e-5


def _round_up(n, m):
    return (n + m - 1) // m * m


def _cdiv(a, b):
    return (a + b - 1) // b


def ff_kernel(x_ref, w1, w2, w3, w4, w5, shifts_ref, b6_ref, out_ref):
    sh = shifts_ref[...]                                    # (8, 256) bf16, resident
    h = x_ref[...]                                          # (TB, D) bf16
    # 5x fused [bf16 matmul (f32 acc) -> bf16 (shift + ReLU)]; unrolled on purpose.
    for i, w in enumerate((w1, w2, w3, w4, w5)):
        z = jnp.dot(h, w[...], preferred_element_type=jnp.float32)   # MXU, f32 acc
        h = jnp.maximum(z.astype(jnp.bfloat16) + sh[i], 0.0)         # VPU bf16 epilogue
    # Final Linear(256, 1): bf16 multiply, f32 lane reduction (XLU), EUP sigmoid.
    z = jnp.sum(h * sh[5], axis=-1, keepdims=True, dtype=jnp.float32) + b6_ref[...]
    out_ref[...] = jax.nn.sigmoid(z)                        # (TB, 1) f32


def feedforward_pallas(x, params, *, block_b=1024):
    """x: (B, input_dim) float32. params: list from init_params() (5 weights,
    packed shifts, b6)."""
    B, D = x.shape

    # Adaptive batch tile: >=2 grid steps when possible (v7x megacore), minimal padding.
    n_tiles = _cdiv(B, block_b)
    if n_tiles < 2 and B > 8:
        n_tiles = 2
    TB = min(block_b, _round_up(_cdiv(B, n_tiles), 8))
    B_pad = _round_up(B, TB)
    if B_pad != B:
        x = jnp.pad(x, ((0, B_pad - B), (0, 0)))
    x = x.astype(jnp.bfloat16)
    grid = (B_pad // TB,)

    def resident(shape):
        # Full-array block, same block every grid step -> stays resident in VMEM.
        return pl.BlockSpec(shape, lambda i: (0,) * len(shape))

    in_specs = [pl.BlockSpec((TB, D), lambda i: (i, 0))]
    in_specs += [resident(p.shape) for p in params]
    out_specs = pl.BlockSpec((TB, 1), lambda i: (i, 0))

    hidden_flops = 2 * D * HIDDEN + 4 * 2 * HIDDEN * HIDDEN + 5 * 2 * HIDDEN
    final_flops = 2 * HIDDEN + 2
    cost = pl.CostEstimate(
        flops=int(B_pad * (hidden_flops + final_flops)),
        transcendentals=int(B_pad),
        bytes_accessed=int(x.size * 2 + B_pad * 4
                           + sum(int(p.size) * p.dtype.itemsize for p in params)),
    )

    out = pl.pallas_call(
        ff_kernel,
        out_shape=jax.ShapeDtypeStruct((B_pad, 1), jnp.float32),
        grid=grid,
        in_specs=in_specs,
        out_specs=out_specs,
        compiler_params=pltpu.CompilerParams(
            dimension_semantics=("parallel",),      # megacore-shard batch tiles (v7x)
            vmem_limit_bytes=32 * 1024 * 1024,      # resident set ~1-2 MiB + tiles; safe everywhere
        ),
        cost_estimate=cost,
    )(x, *params)
    return out[:B]


def init_params(key, input_dim):
    """Deterministic synthetic parameters (eval-mode BN folded).

    Returns [W1..W5 (in,256) bf16 with BN scale folded into the columns,
             shifts_packed (8,256) bf16 (rows 0-4: per-layer shift, row 5: final
             weight row w6, rows 6-7: zero),
             b6 (1,1) f32]."""
    weights = []
    shifts = []
    dims_in = [input_dim, HIDDEN, HIDDEN, HIDDEN, HIDDEN]
    for d_in in dims_in:
        key, kw, kb, kg, kbe, km, kv = jax.random.split(key, 7)
        W = jax.random.normal(kw, (d_in, HIDDEN), jnp.float32) * (1.0 / jnp.sqrt(d_in))
        b = jax.random.normal(kb, (HIDDEN,), jnp.float32) * 0.1
        gamma = 1.0 + 0.1 * jax.random.normal(kg, (HIDDEN,), jnp.float32)
        beta = 0.1 * jax.random.normal(kbe, (HIDDEN,), jnp.float32)
        run_mean = 0.1 * jax.random.normal(km, (HIDDEN,), jnp.float32)
        run_var = jnp.abs(1.0 + 0.1 * jax.random.normal(kv, (HIDDEN,), jnp.float32))
        #   y = ((xW + b) - mean) / sqrt(var+eps) * gamma + beta
        #     = x (W*scale) + shift     with scale = gamma/sqrt(var+eps),
        #                                    shift = beta + (b - mean)*scale
        scale = gamma / jnp.sqrt(run_var + EPS)
        shift = beta + (b - run_mean) * scale
        weights.append((W * scale[None, :]).astype(jnp.bfloat16))   # fold in f32, cast once
        shifts.append(shift)
    key, kw, kb = jax.random.split(key, 3)
    w6 = jax.random.normal(kw, (HIDDEN,), jnp.float32) * (1.0 / jnp.sqrt(HIDDEN))
    b6 = jax.random.normal(kb, (1,), jnp.float32) * 0.1

    packed = jnp.zeros((8, HIDDEN), jnp.float32)
    for i, s in enumerate(shifts):
        packed = packed.at[i].set(s)
    packed = packed.at[5].set(w6)
    packed = packed.astype(jnp.bfloat16)

    return weights + [packed, b6.reshape(1, 1)]


def feedforward_ref(x, params):
    """Pure-JAX reference mirroring the kernel numerics (bf16 operands & epilogue,
    f32 matmul accumulation, f32 final reduce + sigmoid)."""
    ws, sh, b6 = params[:5], params[5], params[6]
    h = x.astype(jnp.bfloat16)
    for i in range(5):
        z = jnp.dot(h, ws[i], preferred_element_type=jnp.float32)
        h = jnp.maximum(z.astype(jnp.bfloat16) + sh[i], 0.0)
    z = jnp.sum(h * sh[5], axis=-1, keepdims=True, dtype=jnp.float32) + b6
    return jax.nn.sigmoid(z)


if __name__ == "__main__":
    key = jax.random.PRNGKey(0)
    key, kx, kp, kx2 = jax.random.split(key, 4)

    # Small demo shape (single grid step).
    B, input_dim = 8, 32
    x = jax.random.normal(kx, (B, input_dim), jnp.float32)
    params = init_params(kp, input_dim)

    out = jax.block_until_ready(feedforward_pallas(x, params))
    ref = feedforward_ref(x, params)
    assert out.shape == (B, 1)
    assert jnp.allclose(out, ref, atol=2e-3, rtol=2e-3), (out, ref)

    # Larger batch: exercises adaptive tiling, batch padding, multi-step grid,
    # resident weights.
    B2 = 777
    x2 = jax.random.normal(kx2, (B2, input_dim), jnp.float32)
    out2 = jax.block_until_ready(feedforward_pallas(x2, params))
    ref2 = feedforward_ref(x2, params)
    assert out2.shape == (B2, 1)
    assert jnp.allclose(out2, ref2, atol=2e-3, rtol=2e-3)

    print("KERNEL_OK")
</pallas_src>

<mosaic_0001>
module attributes {stable_mosaic.version = 11 : i64} {
  func.func @ff_kernel(%arg0: i32, %arg1: memref<8x32xbf16, #tpu.memory_space<vmem>>, %arg2: memref<32x256xbf16, #tpu.memory_space<vmem>>, %arg3: memref<256x256xbf16, #tpu.memory_space<vmem>>, %arg4: memref<256x256xbf16, #tpu.memory_space<vmem>>, %arg5: memref<256x256xbf16, #tpu.memory_space<vmem>>, %arg6: memref<256x256xbf16, #tpu.memory_space<vmem>>, %arg7: memref<8x256xbf16, #tpu.memory_space<vmem>>, %arg8: memref<1x1xf32, #tpu.memory_space<vmem>>, %arg9: memref<8x1xf32, #tpu.memory_space<vmem>>) attributes {dimension_semantics = [#tpu.dimension_semantics<parallel>], iteration_bounds = array<i64: 1>, scalar_prefetch = 0 : i64, scratch_operands = 0 : i64, tpu.core_type = #tpu.core_type<tc>, window_params = [{transform_indices = @transform_0, window_bounds = array<i64: 8, 32>}, {pipeline_mode = #tpu.pipeline_mode<synchronous>, transform_indices = @transform_1, window_bounds = array<i64: 32, 256>}, {pipeline_mode = #tpu.pipeline_mode<synchronous>, transform_indices = @transform_2, window_bounds = array<i64: 256, 256>}, {pipeline_mode = #tpu.pipeline_mode<synchronous>, transform_indices = @transform_3, window_bounds = array<i64: 256, 256>}, {pipeline_mode = #tpu.pipeline_mode<synchronous>, transform_indices = @transform_4, window_bounds = array<i64: 256, 256>}, {pipeline_mode = #tpu.pipeline_mode<synchronous>, transform_indices = @transform_5, window_bounds = array<i64: 256, 256>}, {pipeline_mode = #tpu.pipeline_mode<synchronous>, transform_indices = @transform_6, window_bounds = array<i64: 8, 256>}, {pipeline_mode = #tpu.pipeline_mode<synchronous>, transform_indices = @transform_7, window_bounds = array<i64: 1, 1>}, {transform_indices = @transform_8, window_bounds = array<i64: 8, 1>}]} {
    %c0 = arith.constant 0 : index
    %c0_0 = arith.constant 0 : index
    %0 = vector.load %arg7[%c0, %c0_0] : memref<8x256xbf16, #tpu.memory_space<vmem>>, vector<8x256xbf16>
    %c0_1 = arith.constant 0 : index
    %c0_2 = arith.constant 0 : index
    %1 = vector.load %arg1[%c0_1, %c0_2] : memref<8x32xbf16, #tpu.memory_space<vmem>>, vector<8x32xbf16>
    %c0_3 = arith.constant 0 : index
    %c0_4 = arith.constant 0 : index
    %2 = vector.load %arg2[%c0_3, %c0_4] : memref<32x256xbf16, #tpu.memory_space<vmem>>, vector<32x256xbf16>
    %cst = arith.constant dense<0.000000e+00> : vector<8x256xf32>
    %3 = tpu.matmul %1, %2, %cst {dimension_numbers = #tpu.dot_dimension_numbers<[1], [0], [0], [1], [0, 0, 1, 1], [], []>} : vector<8x32xbf16>, vector<32x256xbf16>, vector<8x256xf32> -> vector<8x256xf32>
    %4 = arith.truncf %3 : vector<8x256xf32> to vector<8x256xbf16>
    %5 = vector.extract_strided_slice %0 {offsets = [0, 0], sizes = [1, 256], strides = [1, 1]} : vector<8x256xbf16> to vector<1x256xbf16>
    %6 = vector.shape_cast %5 : vector<1x256xbf16> to vector<256xbf16>
    %7 = vector.shape_cast %6 : vector<256xbf16> to vector<1x256xbf16>
    %8 = vector.broadcast %7 : vector<1x256xbf16> to vector<8x256xbf16>
    %9 = arith.addf %4, %8 : vector<8x256xbf16>
    %cst_5 = arith.constant 0.000000e+00 : bf16
    %10 = vector.broadcast %cst_5 : bf16 to vector<8x256xbf16>
    %11 = arith.maximumf %9, %10 : vector<8x256xbf16>
    %c0_6 = arith.constant 0 : index
    %c0_7 = arith.constant 0 : index
    %12 = vector.load %arg3[%c0_6, %c0_7] : memref<256x256xbf16, #tpu.memory_space<vmem>>, vector<256x256xbf16>
    %cst_8 = arith.constant dense<0.000000e+00> : vector<8x256xf32>
    %13 = tpu.matmul %11, %12, %cst_8 {dimension_numbers = #tpu.dot_dimension_numbers<[1], [0], [0], [1], [0, 0, 1, 1], [], []>} : vector<8x256xbf16>, vector<256x256xbf16>, vector<8x256xf32> -> vector<8x256xf32>
    %14 = arith.truncf %13 : vector<8x256xf32> to vector<8x256xbf16>
    %15 = vector.extract_strided_slice %0 {offsets = [1, 0], sizes = [1, 256], strides = [1, 1]} : vector<8x256xbf16> to vector<1x256xbf16>
    %16 = vector.shape_cast %15 : vector<1x256xbf16> to vector<256xbf16>
    %17 = vector.shape_cast %16 : vector<256xbf16> to vector<1x256xbf16>
    %18 = vector.broadcast %17 : vector<1x256xbf16> to vector<8x256xbf16>
    %19 = arith.addf %14, %18 : vector<8x256xbf16>
    %cst_9 = arith.constant 0.000000e+00 : bf16
    %20 = vector.broadcast %cst_9 : bf16 to vector<8x256xbf16>
    %21 = arith.maximumf %19, %20 : vector<8x256xbf16>
    %c0_10 = arith.constant 0 : index
    %c0_11 = arith.constant 0 : index
    %22 = vector.load %arg4[%c0_10, %c0_11] : memref<256x256xbf16, #tpu.memory_space<vmem>>, vector<256x256xbf16>
    %cst_12 = arith.constant dense<0.000000e+00> : vector<8x256xf32>
    %23 = tpu.matmul %21, %22, %cst_12 {dimension_numbers = #tpu.dot_dimension_numbers<[1], [0], [0], [1], [0, 0, 1, 1], [], []>} : vector<8x256xbf16>, vector<256x256xbf16>, vector<8x256xf32> -> vector<8x256xf32>
    %24 = arith.truncf %23 : vector<8x256xf32> to vector<8x256xbf16>
    %25 = vector.extract_strided_slice %0 {offsets = [2, 0], sizes = [1, 256], strides = [1, 1]} : vector<8x256xbf16> to vector<1x256xbf16>
    %26 = vector.shape_cast %25 : vector<1x256xbf16> to vector<256xbf16>
    %27 = vector.shape_cast %26 : vector<256xbf16> to vector<1x256xbf16>
    %28 = vector.broadcast %27 : vector<1x256xbf16> to vector<8x256xbf16>
    %29 = arith.addf %24, %28 : vector<8x256xbf16>
    %cst_13 = arith.constant 0.000000e+00 : bf16
    %30 = vector.broadcast %cst_13 : bf16 to vector<8x256xbf16>
    %31 = arith.maximumf %29, %30 : vector<8x256xbf16>
    %c0_14 = arith.constant 0 : index
    %c0_15 = arith.constant 0 : index
    %32 = vector.load %arg5[%c0_14, %c0_15] : memref<256x256xbf16, #tpu.memory_space<vmem>>, vector<256x256xbf16>
    %cst_16 = arith.constant dense<0.000000e+00> : vector<8x256xf32>
    %33 = tpu.matmul %31, %32, %cst_16 {dimension_numbers = #tpu.dot_dimension_numbers<[1], [0], [0], [1], [0, 0, 1, 1], [], []>} : vector<8x256xbf16>, vector<256x256xbf16>, vector<8x256xf32> -> vector<8x256xf32>
    %34 = arith.truncf %33 : vector<8x256xf32> to vector<8x256xbf16>
    %35 = vector.extract_strided_slice %0 {offsets = [3, 0], sizes = [1, 256], strides = [1, 1]} : vector<8x256xbf16> to vector<1x256xbf16>
    %36 = vector.shape_cast %35 : vector<1x256xbf16> to vector<256xbf16>
    %37 = vector.shape_cast %36 : vector<256xbf16> to vector<1x256xbf16>
    %38 = vector.broadcast %37 : vector<1x256xbf16> to vector<8x256xbf16>
    %39 = arith.addf %34, %38 : vector<8x256xbf16>
    %cst_17 = arith.constant 0.000000e+00 : bf16
    %40 = vector.broadcast %cst_17 : bf16 to vector<8x256xbf16>
    %41 = arith.maximumf %39, %40 : vector<8x256xbf16>
    %c0_18 = arith.constant 0 : index
    %c0_19 = arith.constant 0 : index
    %42 = vector.load %arg6[%c0_18, %c0_19] : memref<256x256xbf16, #tpu.memory_space<vmem>>, vector<256x256xbf16>
    %cst_20 = arith.constant dense<0.000000e+00> : vector<8x256xf32>
    %43 = tpu.matmul %41, %42, %cst_20 {dimension_numbers = #tpu.dot_dimension_numbers<[1], [0], [0], [1], [0, 0, 1, 1], [], []>} : vector<8x256xbf16>, vector<256x256xbf16>, vector<8x256xf32> -> vector<8x256xf32>
    %44 = arith.truncf %43 : vector<8x256xf32> to vector<8x256xbf16>
    %45 = vector.extract_strided_slice %0 {offsets = [4, 0], sizes = [1, 256], strides = [1, 1]} : vector<8x256xbf16> to vector<1x256xbf16>
    %46 = vector.shape_cast %45 : vector<1x256xbf16> to vector<256xbf16>
    %47 = vector.shape_cast %46 : vector<256xbf16> to vector<1x256xbf16>
    %48 = vector.broadcast %47 : vector<1x256xbf16> to vector<8x256xbf16>
    %49 = arith.addf %44, %48 : vector<8x256xbf16>
    %cst_21 = arith.constant 0.000000e+00 : bf16
    %50 = vector.broadcast %cst_21 : bf16 to vector<8x256xbf16>
    %51 = arith.maximumf %49, %50 : vector<8x256xbf16>
    %52 = vector.extract_strided_slice %0 {offsets = [5, 0], sizes = [1, 256], strides = [1, 1]} : vector<8x256xbf16> to vector<1x256xbf16>
    %53 = vector.shape_cast %52 : vector<1x256xbf16> to vector<256xbf16>
    %54 = vector.shape_cast %53 : vector<256xbf16> to vector<1x256xbf16>
    %55 = vector.broadcast %54 : vector<1x256xbf16> to vector<8x256xbf16>
    %56 = arith.mulf %51, %55 : vector<8x256xbf16>
    %57 = arith.extf %56 : vector<8x256xbf16> to vector<8x256xf32>
    %cst_22 = arith.constant dense<0.000000e+00> : vector<8xf32>
    %58 = vector.multi_reduction <add>, %57, %cst_22 [1] : vector<8x256xf32> to vector<8xf32>
    %59 = vector.shape_cast %58 : vector<8xf32> to vector<8x1xf32>
    %c0_23 = arith.constant 0 : index
    %c0_24 = arith.constant 0 : index
    %60 = vector.load %arg8[%c0_23, %c0_24] : memref<1x1xf32, #tpu.memory_space<vmem>>, vector<1x1xf32>
    %61 = vector.broadcast %60 : vector<1x1xf32> to vector<8x1xf32>
    %62 = arith.addf %59, %61 : vector<8x1xf32>
    %63 = arith.negf %62 : vector<8x1xf32>
    %64 = math.exp %63 : vector<8x1xf32>
    %cst_25 = arith.constant 1.000000e+00 : f32
    %65 = vector.broadcast %cst_25 : f32 to vector<8x1xf32>
    %66 = arith.addf %65, %64 : vector<8x1xf32>
    %67 = arith.divf %65, %66 : vector<8x1xf32>
    %c0_26 = arith.constant 0 : index
    %c0_27 = arith.constant 0 : index
    %68 = vector.load %arg9[%c0_26, %c0_27] : memref<8x1xf32, #tpu.memory_space<vmem>>, vector<8x1xf32>
    tpu.vector_store %arg9[%c0_26, %c0_27], %67 {strides = array<i32>} : memref<8x1xf32, #tpu.memory_space<vmem>>, vector<8x1xf32>,
    return
  }
  func.func @transform_0(%arg0: i32) -> (i32, i32) {
    %c0_i32 = arith.constant 0 : i32
    %c0_i32_0 = arith.constant 0 : i32
    return %arg0, %c0_i32 : i32, i32
  }
  func.func @transform_1(%arg0: i32) -> (i32, i32) {
    %c0_i32 = arith.constant 0 : i32
    %c0_i32_0 = arith.constant 0 : i32
    %c0_i32_1 = arith.constant 0 : i32
    return %c0_i32, %c0_i32_0 : i32, i32
  }
  func.func @transform_2(%arg0: i32) -> (i32, i32) {
    %c0_i32 = arith.constant 0 : i32
    %c0_i32_0 = arith.constant 0 : i32
    %c0_i32_1 = arith.constant 0 : i32
    return %c0_i32, %c0_i32_0 : i32, i32
  }
  func.func @transform_3(%arg0: i32) -> (i32, i32) {
    %c0_i32 = arith.constant 0 : i32
    %c0_i32_0 = arith.constant 0 : i32
    %c0_i32_1 = arith.constant 0 : i32
    return %c0_i32, %c0_i32_0 : i32, i32
  }
  func.func @transform_4(%arg0: i32) -> (i32, i32) {
    %c0_i32 = arith.constant 0 : i32
    %c0_i32_0 = arith.constant 0 : i32
    %c0_i32_1 = arith.constant 0 : i32
    return %c0_i32, %c0_i32_0 : i32, i32
  }
  func.func @transform_5(%arg0: i32) -> (i32, i32) {
    %c0_i32 = arith.constant 0 : i32
    %c0_i32_0 = arith.constant 0 : i32
    %c0_i32_1 = arith.constant 0 : i32
    return %c0_i32, %c0_i32_0 : i32, i32
  }
  func.func @transform_6(%arg0: i32) -> (i32, i32) {
    %c0_i32 = arith.constant 0 : i32
    %c0_i32_0 = arith.constant 0 : i32
    %c0_i32_1 = arith.constant 0 : i32
    return %c0_i32, %c0_i32_0 : i32, i32
  }
  func.func @transform_7(%arg0: i32) -> (i32, i32) {
    %c0_i32 = arith.constant 0 : i32
    %c0_i32_0 = arith.constant 0 : i32
    %c0_i32_1 = arith.constant 0 : i32
    return %c0_i32, %c0_i32_0 : i32, i32
  }
  func.func @transform_8(%arg0: i32) -> (i32, i32) {
    %c0_i32 = arith.constant 0 : i32
    %c0_i32_0 = arith.constant 0 : i32
    return %arg0, %c0_i32 : i32, i32
  }
}

</mosaic_0001>

<llo_original>
// kernel: tpu_custom_call.1
$region0: #{tpu_custom_call.1}
  #allocation0 [shape = 'u32[]', space=smem, size = 0x4, offset = 0x4, fixed_abs, tag = 'smem constant byte address 0x4 - core index']
  #allocation1 [shape = 'u32[144,128]{1,0:T(1,128)}', space=vmem, size = 0x12000, scoped, tag = 'internal scratch']
  #allocation2 [shape = 'f32[1,1]{1,0:T(1,128)S(1)}', space=vmem, size = 0x200, scoped, tag = 'scoped memory for tpu_custom_call.1']
  %s0 = inlined_call_operand.hbm [shape: bf16[8,32], index: 0, kind: input, shape index: {}]
  %s1 = inlined_call_operand.hbm [shape: bf16[32,256], index: 1, kind: input, shape index: {}]
  %s2 = inlined_call_operand.hbm [shape: bf16[256,256], index: 2, kind: input, shape index: {}]
  %s3 = inlined_call_operand.hbm [shape: bf16[256,256], index: 3, kind: input, shape index: {}]
  %s4 = inlined_call_operand.hbm [shape: bf16[256,256], index: 4, kind: input, shape index: {}]
  %s5 = inlined_call_operand.hbm [shape: bf16[256,256], index: 5, kind: input, shape index: {}]
  %s6 = inlined_call_operand.vmem [shape: bf16[8,256], index: 6, kind: input, shape index: {}]
  %s7 = inlined_call_operand.<no memory space> [shape: f32[1,1], index: 7, kind: input, shape index: {}]
  %s8 = inlined_call_operand.vmem [shape: f32[8,1], index: 8, kind: output, shape index: {}]
  %s9 = sld [smem:[#allocation0]]
  $region66: #{tpu_custom_call.1} parent=0
    _
  %s11 = ssub.s32 1, %s9
  %s12 = scalar_select 0, %s11, %s9
  %v13 = vstv %s7
  %14 = vst [vmem:[#allocation2] sm:$0x1] %v13
  $region1: #{tpu_custom_call.1} parent=0
    #allocation3 [shape = 'u8[2048]{0}', space=vmem, size = 0x800, scoped, tag = 'input window, operand 0, single buffered']
    #allocation4 [shape = 's32[1]{0}', space=sflag, size = 0x4, scoped, tag = 'scoped memory for tpu_custom_call.1']
    #allocation5 [shape = 'u8[16384]{0}', space=vmem, size = 0x4000, scoped, tag = 'input window, operand 1, single buffered']
    #allocation6 [shape = 's32[1]{0}', space=sflag, size = 0x4, scoped, tag = 'scoped memory for tpu_custom_call.1']
    #allocation7 [shape = 'u8[131072]{0}', space=vmem, size = 0x20000, scoped, tag = 'input window, operand 2, single buffered']
    #allocation8 [shape = 'u8[131072]{0}', space=vmem, size = 0x20000, scoped, tag = 'input window, operand 3, single buffered']
    #allocation9 [shape = 's32[1]{0}', space=sflag, size = 0x4, scoped, tag = 'scoped memory for tpu_custom_call.1']
    #allocation10 [shape = 'u8[131072]{0}', space=vmem, size = 0x20000, scoped, tag = 'input window, operand 4, single buffered']
    #allocation11 [shape = 'u8[131072]{0}', space=vmem, size = 0x20000, scoped, tag = 'input window, operand 5, single buffered']
    #allocation12 [shape = 's32[1]{0}', space=sflag, size = 0x4, scoped, tag = 'scoped memory for tpu_custom_call.1']
    %15 = vsyncpa [#allocation4], 0
    %16 = vsyncpa [#allocation6], 0
    %17 = vsyncpa [#allocation9], 0
    %18 = vsyncpa [#allocation12], 0
    // Predicated region
    $region2: #{tpu_custom_call.1} parent=1 // pred_check
      _
    $region3: #{tpu_custom_call.1} parent=1 // pred_check_branch
      %20 = sbr.rel (0) target = $region5
    $region4: #{tpu_custom_call.1} parent=1 // pred_region
      %s22 = ssub.s32 64, 64
      %23 = vsyncadd [#allocation4], %s22
      %s25 = sshll.u32 [#allocation3], 4
      %s26 = int_to_ptr.vmem [resolvable:$true] %s25
      %28 = dma.hbm_to_vmem [thread:$0]  %s0, 64, %s26, [#allocation4]
    $region5: #{tpu_custom_call.1} parent=1 // pred_fallthru
      _
    // Predicated region
    $region6: #{tpu_custom_call.1} parent=1 // pred_check
      _
    $region7: #{tpu_custom_call.1} parent=1 // pred_check_branch
      %30 = sbr.rel (0) target = $region9
    $region8: #{tpu_custom_call.1} parent=1 // pred_region
      %s32 = ssub.s32 512, 512
      %33 = vsyncadd [#allocation6], %s32
      %s34 = sshll.u32 [#allocation5], 4
      %s35 = int_to_ptr.vmem [resolvable:$true] %s34
      %40 = dma.hbm_to_vmem [thread:$0]  %s1, 512, %s35, [#allocation6], 128, 128, 8
    $region9: #{tpu_custom_call.1} parent=1 // pred_fallthru
      _
    // Predicated region
    $region10: #{tpu_custom_call.1} parent=1 // pred_check
      _
    $region11: #{tpu_custom_call.1} parent=1 // pred_check_branch
      %42 = sbr.rel (0) target = $region13
    $region12: #{tpu_custom_call.1} parent=1 // pred_region
      %s44 = ssub.s32 4096, 4096
      %45 = vsyncadd [#allocation6], %s44
      %s46 = sshll.u32 [#allocation7], 4
      %s47 = int_to_ptr.vmem [resolvable:$true] %s46
      %52 = dma.hbm_to_vmem [thread:$0]  %s2, 4096, %s47, [#allocation6], 128, 128, 8
    $region13: #{tpu_custom_call.1} parent=1 // pred_fallthru
      _
    // Predicated region
    $region14: #{tpu_custom_call.1} parent=1 // pred_check
      _
    $region15: #{tpu_custom_call.1} parent=1 // pred_check_branch
      %54 = sbr.rel (0) target = $region17
    $region16: #{tpu_custom_call.1} parent=1 // pred_region
      %s56 = ssub.s32 4096, 4096
      %57 = vsyncadd [#allocation9], %s56
      %s58 = sshll.u32 [#allocation8], 4
      %s59 = int_to_ptr.vmem [resolvable:$true] %s58
      %64 = dma.hbm_to_vmem [thread:$0]  %s3, 4096, %s59, [#allocation9], 128, 128, 8
    $region17: #{tpu_custom_call.1} parent=1 // pred_fallthru
      _
    // Predicated region
    $region18: #{tpu_custom_call.1} parent=1 // pred_check
      _
    $region19: #{tpu_custom_call.1} parent=1 // pred_check_branch
      %66 = sbr.rel (0) target = $region21
    $region20: #{tpu_custom_call.1} parent=1 // pred_region
      %s68 = ssub.s32 4096, 4096
      %69 = vsyncadd [#allocation9], %s68
      %s70 = sshll.u32 [#allocation10], 4
      %s71 = int_to_ptr.vmem [resolvable:$true] %s70
      %76 = dma.hbm_to_vmem [thread:$0]  %s4, 4096, %s71, [#allocation9], 128, 128, 8
    $region21: #{tpu_custom_call.1} parent=1 // pred_fallthru
      _
    // Predicated region
    $region22: #{tpu_custom_call.1} parent=1 // pred_check
      _
    $region23: #{tpu_custom_call.1} parent=1 // pred_check_branch
      %78 = sbr.rel (0) target = $region25
    $region24: #{tpu_custom_call.1} parent=1 // pred_region
      %s80 = ssub.s32 4096, 4096
      %81 = vsyncadd [#allocation12], %s80
      %s82 = sshll.u32 [#allocation11], 4
      %s83 = int_to_ptr.vmem [resolvable:$true] %s82
      %88 = dma.hbm_to_vmem [thread:$0]  %s5, 4096, %s83, [#allocation12], 128, 128, 8
    $region25: #{tpu_custom_call.1} parent=1 // pred_fallthru
      _
    // Predicated region
    $region26: #{tpu_custom_call.1} parent=1 // pred_check
      _
    $region27: #{tpu_custom_call.1} parent=1 // pred_check_branch
      %90 = sbr.rel (0) target = $region29
    $region28: #{tpu_custom_call.1} parent=1 // pred_region
      _
    $region29: #{tpu_custom_call.1} parent=1 // pred_fallthru
      _
    // Predicated region
    $region30: #{tpu_custom_call.1} parent=1 // pred_check
      _
    $region31: #{tpu_custom_call.1} parent=1 // pred_check_branch
      %92 = sbr.rel (0) target = $region33
    $region32: #{tpu_custom_call.1} parent=1 // pred_region
      _
    $region33: #{tpu_custom_call.1} parent=1 // pred_fallthru
      _
    // Predicated region
    $region34: #{tpu_custom_call.1} parent=1 // pred_check
      _
    $region35: #{tpu_custom_call.1} parent=1 // pred_check_branch
      %94 = sbr.rel (0) target = $region37
    $region36: #{tpu_custom_call.1} parent=1 // pred_region
      %95 = dma.done [#allocation4], 64
    $region37: #{tpu_custom_call.1} parent=1 // pred_fallthru
      _
    // Predicated region
    $region38: #{tpu_custom_call.1} parent=1 // pred_check
      _
    $region39: #{tpu_custom_call.1} parent=1 // pred_check_branch
      %97 = sbr.rel (0) target = $region41
    $region40: #{tpu_custom_call.1} parent=1 // pred_region
      %98 = dma.done [#allocation6], 512
    $region41: #{tpu_custom_call.1} parent=1 // pred_fallthru
      _
    // Predicated region
    $region42: #{tpu_custom_call.1} parent=1 // pred_check
      _
    $region43: #{tpu_custom_call.1} parent=1 // pred_check_branch
      %100 = sbr.rel (0) target = $region45
    $region44: #{tpu_custom_call.1} parent=1 // pred_region
      %101 = dma.done [#allocation6], 4096
    $region45: #{tpu_custom_call.1} parent=1 // pred_fallthru
      _
    // Predicated region
    $region46: #{tpu_custom_call.1} parent=1 // pred_check
      _
    $region47: #{tpu_custom_call.1} parent=1 // pred_check_branch
      %103 = sbr.rel (0) target = $region49
    $region48: #{tpu_custom_call.1} parent=1 // pred_region
      %104 = dma.done [#allocation9], 4096
    $region49: #{tpu_custom_call.1} parent=1 // pred_fallthru
      _
    // Predicated region
    $region50: #{tpu_custom_call.1} parent=1 // pred_check
      _
    $region51: #{tpu_custom_call.1} parent=1 // pred_check_branch
      %106 = sbr.rel (0) target = $region53
    $region52: #{tpu_custom_call.1} parent=1 // pred_region
      %107 = dma.done [#allocation9], 4096
    $region53: #{tpu_custom_call.1} parent=1 // pred_fallthru
      _
    // Predicated region
    $region54: #{tpu_custom_call.1} parent=1 // pred_check
      _
    $region55: #{tpu_custom_call.1} parent=1 // pred_check_branch
      %109 = sbr.rel (0) target = $region57
    $region56: #{tpu_custom_call.1} parent=1 // pred_region
      %110 = dma.done [#allocation12], 4096
    $region57: #{tpu_custom_call.1} parent=1 // pred_fallthru
      _
    %v112 = vld [vmem:[%s6] sm:$0xff]
    %v113 = vld [vmem:[#allocation3] sm:$0xf]
    %v114 = vld [vmem:[#allocation5] sm:$0xff]
    %v115 = vld [vmem:[#allocation5 + $0x8] sm:$0xff]
    %v116 = vld [vmem:[#allocation5 + $0x10] sm:$0xff]
    %v117 = vld [vmem:[#allocation5 + $0x18] sm:$0xff]
    %v122 = vunpack.c.l.b16 %v114
    %v123 = vunpack.c.h.b16 %v114
    %v124 = vunpack.c.l.b16 %v115
    %v125 = vunpack.c.h.b16 %v115
    %v126 = vunpack.c.l.b16 %v116
    %v127 = vunpack.c.h.b16 %v116
    %v128 = vunpack.c.l.b16 %v117
    %v129 = vunpack.c.h.b16 %v117
    %v130 = vpack.c.b16 %v124, %v122
    %v131 = vpack.c.b16 %v125, %v123
    %v132 = vpack.c.b16 %v128, %v126
    %v133 = vpack.c.b16 %v129, %v127
    %vm138 = vcmask 261120
    %v140 = vsel %vm138, %v113, 0
    %142 = vmatprep.subr.bf16.mxu0 %v131
    %143 = vmatpush1.bf16.msra.mxu0 %v130
    %144 = vmatprep.subr.bf16.mxu0 %v133
    %145 = vmatpush1.bf16.msra.mxu0 %v132
    %146 = vmatprep.subr.bf16.mxu0 0
    %147 = vmatpush1.bf16.msra.mxu0 0
    %148 = vmatprep.subr.bf16.mxu0 0
    %149 = vmatpush1.bf16.msra.mxu0 0
    %150 = vmatprep.subr.bf16.mxu0 0
    %151 = vmatpush1.bf16.msra.mxu0 0
    %152 = vmatprep.subr.bf16.mxu0 0
    %153 = vmatpush1.bf16.msra.mxu0 0
    %154 = vmatprep.subr.bf16.mxu0 0
    %155 = vmatpush1.bf16.msra.mxu0 0
    %156 = vmatprep.subr.bf16.mxu0 0
    %157 = vmatpush1.bf16.msra.mxu0 0
    %158 = vmatprep.subr.bf16.mxu0 0
    %159 = vmatpush1.bf16.msra.mxu0 0
    %160 = vmatprep.subr.bf16.mxu0 0
    %161 = vmatpush1.bf16.msra.mxu0 0
    %162 = vmatprep.subr.bf16.mxu0 0
    %163 = vmatpush1.bf16.msra.mxu0 0
    %164 = vmatprep.subr.bf16.mxu0 0
    %165 = vmatpush1.bf16.msra.mxu0 0
    %166 = vmatprep.subr.bf16.mxu0 0
    %167 = vmatpush1.bf16.msra.mxu0 0
    %168 = vmatprep.subr.bf16.mxu0 0
    %169 = vmatpush1.bf16.msra.mxu0 0
    %170 = vmatprep.subr.bf16.mxu0 0
    %171 = vmatpush1.bf16.msra.mxu0 0
    %172 = vmatprep.subr.bf16.mxu0 0
    %173 = vmatpush1.bf16.msra.mxu0 0
    %174 = vmatprep.mubr.bf16.mxu0 0
    %175 = vmatmul.mubr.bf16.gmra.mrb[0].mxu0 %v140
    %v176 = vpop.f32.mrb[0].mxu0
    %v177 = vadd.f32 0.0, %v176
    %v178 = vpop.f32.mrb[0].mxu0
    %v179 = vadd.f32 0.0, %v178
    %v180 = vpop.f32.mrb[0].mxu0
    %v181 = vpop.f32.mrb[0].mxu0
    %182 = vdwg.mxu0
    %v183 = vpack.c.bf16 %v177, %v177
    %v184 = vpack.c.bf16 %v179, %v179
    %v186 = vunpack.c.l.b16 %v112
    %v187 = vunpack.c.h.b16 %v112
    %v188 = vpack.c.b16 %v186, %v186
    %v189 = vpack.c.b16 %v187, %v187
    %v191 = vpack.i.b16 %v188, %v188
    %v193 = vlaneseq
    %v194 = vshrl.u32 %v193, 7
    %v195 = vsub.s32 0, %v194
    %v196 = vrot.slane %v191, %v195
    %v198 = vpack.i.b16 %v189, %v189
    %v200 = vlaneseq
    %v201 = vshrl.u32 %v200, 7
    %v202 = vsub.s32 0, %v201
    %v203 = vrot.slane %v198, %v202
    %v204 = vadd.bf16 %v183, %v196
    %v205 = vadd.bf16 %v184, %v203
    %v206 = vmax.bf16 %v204, 0
    %v207 = vmax.bf16 %v205, 0
    %v208 = vld [vmem:[#allocation7] sm:$0xff]
    %v209 = vld [vmem:[#allocation7 + $0x8] sm:$0xff]
    %v210 = vld [vmem:[#allocation7 + $0x10] sm:$0xff]
    %v211 = vld [vmem:[#allocation7 + $0x18] sm:$0xff]
    %v212 = vld [vmem:[#allocation7 + $0x20] sm:$0xff]
    %v213 = vld [vmem:[#allocation7 + $0x28] sm:$0xff]
    %v214 = vld [vmem:[#allocation7 + $0x30] sm:$0xff]
    %v215 = vld [vmem:[#allocation7 + $0x38] sm:$0xff]
    %v216 = vld [vmem:[#allocation7 + $0x40] sm:$0xff]
    %v217 = vld [vmem:[#allocation7 + $0x48] sm:$0xff]
    %v218 = vld [vmem:[#allocation7 + $0x50] sm:$0xff]
    %v219 = vld [vmem:[#allocation7 + $0x58] sm:$0xff]
    %v220 = vld [vmem:[#allocation7 + $0x60] sm:$0xff]
    %v221 = vld [vmem:[#allocation7 + $0x68] sm:$0xff]
    %v222 = vld [vmem:[#allocation7 + $0x70] sm:$0xff]
    %v223 = vld [vmem:[#allocation7 + $0x78] sm:$0xff]
    %v224 = vld [vmem:[#allocation7 + $0x80] sm:$0xff]
    %v225 = vld [vmem:[#allocation7 + $0x88] sm:$0xff]
    %v226 = vld [vmem:[#allocation7 + $0x90] sm:$0xff]
    %v227 = vld [vmem:[#allocation7 + $0x98] sm:$0xff]
    %v228 = vld [vmem:[#allocation7 + $0xa0] sm:$0xff]
    %v229 = vld [vmem:[#allocation7 + $0xa8] sm:$0xff]
    %v230 = vld [vmem:[#allocation7 + $0xb0] sm:$0xff]
    %v231 = vld [vmem:[#allocation7 + $0xb8] sm:$0xff]
    %v232 = vld [vmem:[#allocation7 + $0xc0] sm:$0xff]
    %v233 = vld [vmem:[#allocation7 + $0xc8] sm:$0xff]
    %v234 = vld [vmem:[#allocation7 + $0xd0] sm:$0xff]
    %v235 = vld [vmem:[#allocation7 + $0xd8] sm:$0xff]
    %v236 = vld [vmem:[#allocation7 + $0xe0] sm:$0xff]
    %v237 = vld [vmem:[#allocation7 + $0xe8] sm:$0xff]
    %v238 = vld [vmem:[#allocation7 + $0xf0] sm:$0xff]
    %v239 = vld [vmem:[#allocation7 + $0xf8] sm:$0xff]
    %v272 = vunpack.c.l.b16 %v208
    %v273 = vunpack.c.h.b16 %v208
    %v274 = vunpack.c.l.b16 %v209
    %v275 = vunpack.c.h.b16 %v209
    %v276 = vunpack.c.l.b16 %v210
    %v277 = vunpack.c.h.b16 %v210
    %v278 = vunpack.c.l.b16 %v211
    %v279 = vunpack.c.h.b16 %v211
    %v280 = vunpack.c.l.b16 %v212
    %v281 = vunpack.c.h.b16 %v212
    %v282 = vunpack.c.l.b16 %v213
    %v283 = vunpack.c.h.b16 %v213
    %v284 = vunpack.c.l.b16 %v214
    %v285 = vunpack.c.h.b16 %v214
    %v286 = vunpack.c.l.b16 %v215
    %v287 = vunpack.c.h.b16 %v215
    %v288 = vunpack.c.l.b16 %v216
    %v289 = vunpack.c.h.b16 %v216
    %v290 = vunpack.c.l.b16 %v217
    %v291 = vunpack.c.h.b16 %v217
    %v292 = vunpack.c.l.b16 %v218
    %v293 = vunpack.c.h.b16 %v218
    %v294 = vunpack.c.l.b16 %v219
    %v295 = vunpack.c.h.b16 %v219
    %v296 = vunpack.c.l.b16 %v220
    %v297 = vunpack.c.h.b16 %v220
    %v298 = vunpack.c.l.b16 %v221
    %v299 = vunpack.c.h.b16 %v221
    %v300 = vunpack.c.l.b16 %v222
    %v301 = vunpack.c.h.b16 %v222
    %v302 = vunpack.c.l.b16 %v223
    %v303 = vunpack.c.h.b16 %v223
    %v304 = vunpack.c.l.b16 %v224
    %v305 = vunpack.c.h.b16 %v224
    %v306 = vunpack.c.l.b16 %v225
    %v307 = vunpack.c.h.b16 %v225
    %v308 = vunpack.c.l.b16 %v226
    %v309 = vunpack.c.h.b16 %v226
    %v310 = vunpack.c.l.b16 %v227
    %v311 = vunpack.c.h.b16 %v227
    %v312 = vunpack.c.l.b16 %v228
    %v313 = vunpack.c.h.b16 %v228
    %v314 = vunpack.c.l.b16 %v229
    %v315 = vunpack.c.h.b16 %v229
    %v316 = vunpack.c.l.b16 %v230
    %v317 = vunpack.c.h.b16 %v230
    %v318 = vunpack.c.l.b16 %v231
    %v319 = vunpack.c.h.b16 %v231
    %v320 = vunpack.c.l.b16 %v232
    %v321 = vunpack.c.h.b16 %v232
    %v322 = vunpack.c.l.b16 %v233
    %v323 = vunpack.c.h.b16 %v233
    %v324 = vunpack.c.l.b16 %v234
    %v325 = vunpack.c.h.b16 %v234
    %v326 = vunpack.c.l.b16 %v235
    %v327 = vunpack.c.h.b16 %v235
    %v328 = vunpack.c.l.b16 %v236
    %v329 = vunpack.c.h.b16 %v236
    %v330 = vunpack.c.l.b16 %v237
    %v331 = vunpack.c.h.b16 %v237
    %v332 = vunpack.c.l.b16 %v238
    %v333 = vunpack.c.h.b16 %v238
    %v334 = vunpack.c.l.b16 %v239
    %v335 = vunpack.c.h.b16 %v239
    %v336 = vpack.c.b16 %v274, %v272
    %v337 = vpack.c.b16 %v275, %v273
    %v338 = vpack.c.b16 %v278, %v276
    %v339 = vpack.c.b16 %v279, %v277
    %v340 = vpack.c.b16 %v282, %v280
    %v341 = vpack.c.b16 %v283, %v281
    %v342 = vpack.c.b16 %v286, %v284
    %v343 = vpack.c.b16 %v287, %v285
    %v344 = vpack.c.b16 %v290, %v288
    %v345 = vpack.c.b16 %v291, %v289
    %v346 = vpack.c.b16 %v294, %v292
    %v347 = vpack.c.b16 %v295, %v293
    %v348 = vpack.c.b16 %v298, %v296
    %v349 = vpack.c.b16 %v299, %v297
    %v350 = vpack.c.b16 %v302, %v300
    %v351 = vpack.c.b16 %v303, %v301
    %v352 = vpack.c.b16 %v306, %v304
    %v353 = vpack.c.b16 %v307, %v305
    %v354 = vpack.c.b16 %v310, %v308
    %v355 = vpack.c.b16 %v311, %v309
    %v356 = vpack.c.b16 %v314, %v312
    %v357 = vpack.c.b16 %v315, %v313
    %v358 = vpack.c.b16 %v318, %v316
    %v359 = vpack.c.b16 %v319, %v317
    %v360 = vpack.c.b16 %v322, %v320
    %v361 = vpack.c.b16 %v323, %v321
    %v362 = vpack.c.b16 %v326, %v324
    %v363 = vpack.c.b16 %v327, %v325
    %v364 = vpack.c.b16 %v330, %v328
    %v365 = vpack.c.b16 %v331, %v329
    %v366 = vpack.c.b16 %v334, %v332
    %v367 = vpack.c.b16 %v335, %v333
    %400 = vmatprep.subr.bf16.mxu0 %v337
    %401 = vmatpush1.bf16.msra.mxu0 %v336
    %402 = vmatprep.subr.bf16.mxu0 %v339
    %403 = vmatpush1.bf16.msra.mxu0 %v338
    %404 = vmatprep.subr.bf16.mxu0 %v341
    %405 = vmatpush1.bf16.msra.mxu0 %v340
    %406 = vmatprep.subr.bf16.mxu0 %v343
    %407 = vmatpush1.bf16.msra.mxu0 %v342
    %408 = vmatprep.subr.bf16.mxu0 %v345
    %409 = vmatpush1.bf16.msra.mxu0 %v344
    %410 = vmatprep.subr.bf16.mxu0 %v347
    %411 = vmatpush1.bf16.msra.mxu0 %v346
    %412 = vmatprep.subr.bf16.mxu0 %v349
    %413 = vmatpush1.bf16.msra.mxu0 %v348
    %414 = vmatprep.subr.bf16.mxu0 %v351
    %415 = vmatpush1.bf16.msra.mxu0 %v350
    %416 = vmatprep.subr.bf16.mxu0 %v353
    %417 = vmatpush1.bf16.msra.mxu0 %v352
    %418 = vmatprep.subr.bf16.mxu0 %v355
    %419 = vmatpush1.bf16.msra.mxu0 %v354
    %420 = vmatprep.subr.bf16.mxu0 %v357
    %421 = vmatpush1.bf16.msra.mxu0 %v356
    %422 = vmatprep.subr.bf16.mxu0 %v359
    %423 = vmatpush1.bf16.msra.mxu0 %v358
    %424 = vmatprep.subr.bf16.mxu0 %v361
    %425 = vmatpush1.bf16.msra.mxu0 %v360
    %426 = vmatprep.subr.bf16.mxu0 %v363
    %427 = vmatpush1.bf16.msra.mxu0 %v362
    %428 = vmatprep.subr.bf16.mxu0 %v365
    %429 = vmatpush1.bf16.msra.mxu0 %v364
    %430 = vmatprep.subr.bf16.mxu0 %v367
    %431 = vmatpush1.bf16.msra.mxu0 %v366
    %432 = vmatprep.mubr.bf16.mxu0 %v207
    %433 = vmatmul.mubr.bf16.gmra.mrb[0].mxu0 %v206
    %v434 = vpop.f32.mrb[0].mxu0
    %v435 = vadd.f32 0.0, %v434
    %v436 = vpop.f32.mrb[0].mxu0
    %v437 = vadd.f32 0.0, %v436
    %v438 = vpop.f32.mrb[0].mxu0
    %v439 = vpop.f32.mrb[0].mxu0
    %440 = vdwg.mxu0
    %v441 = vpack.c.bf16 %v435, %v435
    %v442 = vpack.c.bf16 %v437, %v437
    %v443 = vshrl.u32 %v188, 16
    %v444 = vpack.i.b16 %v443, %v443
    %v446 = vlaneseq
    %v447 = vshrl.u32 %v446, 7
    %v448 = vsub.s32 0, %v447
    %v449 = vrot.slane %v444, %v448
    %v450 = vshrl.u32 %v189, 16
    %v451 = vpack.i.b16 %v450, %v450
    %v453 = vlaneseq
    %v454 = vshrl.u32 %v453, 7
    %v455 = vsub.s32 0, %v454
    %v456 = vrot.slane %v451, %v455
    %v457 = vadd.bf16 %v441, %v449
    %v458 = vadd.bf16 %v442, %v456
    %v459 = vmax.bf16 %v457, 0
    %v460 = vmax.bf16 %v458, 0
    %v461 = vld [vmem:[#allocation8] sm:$0xff]
    %v462 = vld [vmem:[#allocation8 + $0x8] sm:$0xff]
    %v463 = vld [vmem:[#allocation8 + $0x10] sm:$0xff]
    %v464 = vld [vmem:[#allocation8 + $0x18] sm:$0xff]
    %v465 = vld [vmem:[#allocation8 + $0x20] sm:$0xff]
    %v466 = vld [vmem:[#allocation8 + $0x28] sm:$0xff]
    %v467 = vld [vmem:[#allocation8 + $0x30] sm:$0xff]
    %v468 = vld [vmem:[#allocation8 + $0x38] sm:$0xff]
    %v469 = vld [vmem:[#allocation8 + $0x40] sm:$0xff]
    %v470 = vld [vmem:[#allocation8 + $0x48] sm:$0xff]
    %v471 = vld [vmem:[#allocation8 + $0x50] sm:$0xff]
    %v472 = vld [vmem:[#allocation8 + $0x58] sm:$0xff]
    %v473 = vld [vmem:[#allocation8 + $0x60] sm:$0xff]
    %v474 = vld [vmem:[#allocation8 + $0x68] sm:$0xff]
    %v475 = vld [vmem:[#allocation8 + $0x70] sm:$0xff]
    %v476 = vld [vmem:[#allocation8 + $0x78] sm:$0xff]
    %v477 = vld [vmem:[#allocation8 + $0x80] sm:$0xff]
    %v478 = vld [vmem:[#allocation8 + $0x88] sm:$0xff]
    %v479 = vld [vmem:[#allocation8 + $0x90] sm:$0xff]
    %v480 = vld [vmem:[#allocation8 + $0x98] sm:$0xff]
    %v481 = vld [vmem:[#allocation8 + $0xa0] sm:$0xff]
    %v482 = vld [vmem:[#allocation8 + $0xa8] sm:$0xff]
    %v483 = vld [vmem:[#allocation8 + $0xb0] sm:$0xff]
    %v484 = vld [vmem:[#allocation8 + $0xb8] sm:$0xff]
    %v485 = vld [vmem:[#allocation8 + $0xc0] sm:$0xff]
    %v486 = vld [vmem:[#allocation8 + $0xc8] sm:$0xff]
    %v487 = vld [vmem:[#allocation8 + $0xd0] sm:$0xff]
    %v488 = vld [vmem:[#allocation8 + $0xd8] sm:$0xff]
    %v489 = vld [vmem:[#allocation8 + $0xe0] sm:$0xff]
    %v490 = vld [vmem:[#allocation8 + $0xe8] sm:$0xff]
    %v491 = vld [vmem:[#allocation8 + $0xf0] sm:$0xff]
    %v492 = vld [vmem:[#allocation8 + $0xf8] sm:$0xff]
    %v525 = vunpack.c.l.b16 %v461
    %v526 = vunpack.c.h.b16 %v461
    %v527 = vunpack.c.l.b16 %v462
    %v528 = vunpack.c.h.b16 %v462
    %v529 = vunpack.c.l.b16 %v463
    %v530 = vunpack.c.h.b16 %v463
    %v531 = vunpack.c.l.b16 %v464
    %v532 = vunpack.c.h.b16 %v464
    %v533 = vunpack.c.l.b16 %v465
    %v534 = vunpack.c.h.b16 %v465
    %v535 = vunpack.c.l.b16 %v466
    %v536 = vunpack.c.h.b16 %v466
    %v537 = vunpack.c.l.b16 %v467
    %v538 = vunpack.c.h.b16 %v467
    %v539 = vunpack.c.l.b16 %v468
    %v540 = vunpack.c.h.b16 %v468
    %v541 = vunpack.c.l.b16 %v469
    %v542 = vunpack.c.h.b16 %v469
    %v543 = vunpack.c.l.b16 %v470
    %v544 = vunpack.c.h.b16 %v470
    %v545 = vunpack.c.l.b16 %v471
    %v546 = vunpack.c.h.b16 %v471
    %v547 = vunpack.c.l.b16 %v472
    %v548 = vunpack.c.h.b16 %v472
    %v549 = vunpack.c.l.b16 %v473
    %v550 = vunpack.c.h.b16 %v473
    %v551 = vunpack.c.l.b16 %v474
    %v552 = vunpack.c.h.b16 %v474
    %v553 = vunpack.c.l.b16 %v475
    %v554 = vunpack.c.h.b16 %v475
    %v555 = vunpack.c.l.b16 %v476
    %v556 = vunpack.c.h.b16 %v476
    %v557 = vunpack.c.l.b16 %v477
    %v558 = vunpack.c.h.b16 %v477
    %v559 = vunpack.c.l.b16 %v478
    %v560 = vunpack.c.h.b16 %v478
    %v561 = vunpack.c.l.b16 %v479
    %v562 = vunpack.c.h.b16 %v479
    %v563 = vunpack.c.l.b16 %v480
    %v564 = vunpack.c.h.b16 %v480
    %v565 = vunpack.c.l.b16 %v481
    %v566 = vunpack.c.h.b16 %v481
    %v567 = vunpack.c.l.b16 %v482
    %v568 = vunpack.c.h.b16 %v482
    %v569 = vunpack.c.l.b16 %v483
    %v570 = vunpack.c.h.b16 %v483
    %v571 = vunpack.c.l.b16 %v484
    %v572 = vunpack.c.h.b16 %v484
    %v573 = vunpack.c.l.b16 %v485
    %v574 = vunpack.c.h.b16 %v485
    %v575 = vunpack.c.l.b16 %v486
    %v576 = vunpack.c.h.b16 %v486
    %v577 = vunpack.c.l.b16 %v487
    %v578 = vunpack.c.h.b16 %v487
    %v579 = vunpack.c.l.b16 %v488
    %v580 = vunpack.c.h.b16 %v488
    %v581 = vunpack.c.l.b16 %v489
    %v582 = vunpack.c.h.b16 %v489
    %v583 = vunpack.c.l.b16 %v490
    %v584 = vunpack.c.h.b16 %v490
    %v585 = vunpack.c.l.b16 %v491
    %v586 = vunpack.c.h.b16 %v491
    %v587 = vunpack.c.l.b16 %v492
    %v588 = vunpack.c.h.b16 %v492
    %v589 = vpack.c.b16 %v527, %v525
    %v590 = vpack.c.b16 %v528, %v526
    %v591 = vpack.c.b16 %v531, %v529
    %v592 = vpack.c.b16 %v532, %v530
    %v593 = vpack.c.b16 %v535, %v533
    %v594 = vpack.c.b16 %v536, %v534
    %v595 = vpack.c.b16 %v539, %v537
    %v596 = vpack.c.b16 %v540, %v538
    %v597 = vpack.c.b16 %v543, %v541
    %v598 = vpack.c.b16 %v544, %v542
    %v599 = vpack.c.b16 %v547, %v545
    %v600 = vpack.c.b16 %v548, %v546
    %v601 = vpack.c.b16 %v551, %v549
    %v602 = vpack.c.b16 %v552, %v550
    %v603 = vpack.c.b16 %v555, %v553
    %v604 = vpack.c.b16 %v556, %v554
    %v605 = vpack.c.b16 %v559, %v557
    %v606 = vpack.c.b16 %v560, %v558
    %v607 = vpack.c.b16 %v563, %v561
    %v608 = vpack.c.b16 %v564, %v562
    %v609 = vpack.c.b16 %v567, %v565
    %v610 = vpack.c.b16 %v568, %v566
    %v611 = vpack.c.b16 %v571, %v569
    %v612 = vpack.c.b16 %v572, %v570
    %v613 = vpack.c.b16 %v575, %v573
    %v614 = vpack.c.b16 %v576, %v574
    %v615 = vpack.c.b16 %v579, %v577
    %v616 = vpack.c.b16 %v580, %v578
    %v617 = vpack.c.b16 %v583, %v581
    %v618 = vpack.c.b16 %v584, %v582
    %v619 = vpack.c.b16 %v587, %v585
    %v620 = vpack.c.b16 %v588, %v586
    %653 = vmatprep.subr.bf16.mxu0 %v590
    %654 = vmatpush1.bf16.msra.mxu0 %v589
    %655 = vmatprep.subr.bf16.mxu0 %v592
    %656 = vmatpush1.bf16.msra.mxu0 %v591
    %657 = vmatprep.subr.bf16.mxu0 %v594
    %658 = vmatpush1.bf16.msra.mxu0 %v593
    %659 = vmatprep.subr.bf16.mxu0 %v596
    %660 = vmatpush1.bf16.msra.mxu0 %v595
    %661 = vmatprep.subr.bf16.mxu0 %v598
    %662 = vmatpush1.bf16.msra.mxu0 %v597
    %663 = vmatprep.subr.bf16.mxu0 %v600
    %664 = vmatpush1.bf16.msra.mxu0 %v599
    %665 = vmatprep.subr.bf16.mxu0 %v602
    %666 = vmatpush1.bf16.msra.mxu0 %v601
    %667 = vmatprep.subr.bf16.mxu0 %v604
    %668 = vmatpush1.bf16.msra.mxu0 %v603
    %669 = vmatprep.subr.bf16.mxu0 %v606
    %670 = vmatpush1.bf16.msra.mxu0 %v605
    %671 = vmatprep.subr.bf16.mxu0 %v608
    %672 = vmatpush1.bf16.msra.mxu0 %v607
    %673 = vmatprep.subr.bf16.mxu0 %v610
    %674 = vmatpush1.bf16.msra.mxu0 %v609
    %675 = vmatprep.subr.bf16.mxu0 %v612
    %676 = vmatpush1.bf16.msra.mxu0 %v611
    %677 = vmatprep.subr.bf16.mxu0 %v614
    %678 = vmatpush1.bf16.msra.mxu0 %v613
    %679 = vmatprep.subr.bf16.mxu0 %v616
    %680 = vmatpush1.bf16.msra.mxu0 %v615
    %681 = vmatprep.subr.bf16.mxu0 %v618
    %682 = vmatpush1.bf16.msra.mxu0 %v617
    %683 = vmatprep.subr.bf16.mxu0 %v620
    %684 = vmatpush1.bf16.msra.mxu0 %v619
    %685 = vmatprep.mubr.bf16.mxu0 %v460
    %686 = vmatmul.mubr.bf16.gmra.mrb[0].mxu0 %v459
    %v687 = vpop.f32.mrb[0].mxu0
    %v688 = vadd.f32 0.0, %v687
    %v689 = vpop.f32.mrb[0].mxu0
    %v690 = vadd.f32 0.0, %v689
    %v691 = vpop.f32.mrb[0].mxu0
    %v692 = vpop.f32.mrb[0].mxu0
    %693 = vdwg.mxu0
    %v694 = vpack.c.bf16 %v688, %v688
    %v695 = vpack.c.bf16 %v690, %v690
    %v696 = vlaneseq
    %v697 = vshrl.u32 %v696, 7
    %v698 = vsub.s32 1, %v697
    %v699 = vrot.slane %v191, %v698
    %v700 = vlaneseq
    %v701 = vshrl.u32 %v700, 7
    %v702 = vsub.s32 1, %v701
    %v703 = vrot.slane %v198, %v702
    %v704 = vadd.bf16 %v694, %v699
    %v705 = vadd.bf16 %v695, %v703
    %v706 = vmax.bf16 %v704, 0
    %v707 = vmax.bf16 %v705, 0
    %v708 = vld [vmem:[#allocation10] sm:$0xff]
    %v709 = vld [vmem:[#allocation10 + $0x8] sm:$0xff]
    %v710 = vld [vmem:[#allocation10 + $0x10] sm:$0xff]
    %v711 = vld [vmem:[#allocation10 + $0x18] sm:$0xff]
    %v712 = vld [vmem:[#allocation10 + $0x20] sm:$0xff]
    %v713 = vld [vmem:[#allocation10 + $0x28] sm:$0xff]
    %v714 = vld [vmem:[#allocation10 + $0x30] sm:$0xff]
    %v715 = vld [vmem:[#allocation10 + $0x38] sm:$0xff]
    %v716 = vld [vmem:[#allocation10 + $0x40] sm:$0xff]
    %v717 = vld [vmem:[#allocation10 + $0x48] sm:$0xff]
    %v718 = vld [vmem:[#allocation10 + $0x50] sm:$0xff]
    %v719 = vld [vmem:[#allocation10 + $0x58] sm:$0xff]
    %v720 = vld [vmem:[#allocation10 + $0x60] sm:$0xff]
    %v721 = vld [vmem:[#allocation10 + $0x68] sm:$0xff]
    %v722 = vld [vmem:[#allocation10 + $0x70] sm:$0xff]
    %v723 = vld [vmem:[#allocation10 + $0x78] sm:$0xff]
    %v724 = vld [vmem:[#allocation10 + $0x80] sm:$0xff]
    %v725 = vld [vmem:[#allocation10 + $0x88] sm:$0xff]
    %v726 = vld [vmem:[#allocation10 + $0x90] sm:$0xff]
    %v727 = vld [vmem:[#allocation10 + $0x98] sm:$0xff]
    %v728 = vld [vmem:[#allocation10 + $0xa0] sm:$0xff]
    %v729 = vld [vmem:[#allocation10 + $0xa8] sm:$0xff]
    %v730 = vld [vmem:[#allocation10 + $0xb0] sm:$0xff]
    %v731 = vld [vmem:[#allocation10 + $0xb8] sm:$0xff]
    %v732 = vld [vmem:[#allocation10 + $0xc0] sm:$0xff]
    %v733 = vld [vmem:[#allocation10 + $0xc8] sm:$0xff]
    %v734 = vld [vmem:[#allocation10 + $0xd0] sm:$0xff]
    %v735 = vld [vmem:[#allocation10 + $0xd8] sm:$0xff]
    %v736 = vld [vmem:[#allocation10 + $0xe0] sm:$0xff]
    %v737 = vld [vmem:[#allocation10 + $0xe8] sm:$0xff]
    %v738 = vld [vmem:[#allocation10 + $0xf0] sm:$0xff]
    %v739 = vld [vmem:[#allocation10 + $0xf8] sm:$0xff]
    %v772 = vunpack.c.l.b16 %v708
    %v773 = vunpack.c.h.b16 %v708
    %v774 = vunpack.c.l.b16 %v709
    %v775 = vunpack.c.h.b16 %v709
    %v776 = vunpack.c.l.b16 %v710
    %v777 = vunpack.c.h.b16 %v710
    %v778 = vunpack.c.l.b16 %v711
    %v779 = vunpack.c.h.b16 %v711
    %v780 = vunpack.c.l.b16 %v712
    %v781 = vunpack.c.h.b16 %v712
    %v782 = vunpack.c.l.b16 %v713
    %v783 = vunpack.c.h.b16 %v713
    %v784 = vunpack.c.l.b16 %v714
    %v785 = vunpack.c.h.b16 %v714
    %v786 = vunpack.c.l.b16 %v715
    %v787 = vunpack.c.h.b16 %v715
    %v788 = vunpack.c.l.b16 %v716
    %v789 = vunpack.c.h.b16 %v716
    %v790 = vunpack.c.l.b16 %v717
    %v791 = vunpack.c.h.b16 %v717
    %v792 = vunpack.c.l.b16 %v718
    %v793 = vunpack.c.h.b16 %v718
    %v794 = vunpack.c.l.b16 %v719
    %v795 = vunpack.c.h.b16 %v719
    %v796 = vunpack.c.l.b16 %v720
    %v797 = vunpack.c.h.b16 %v720
    %v798 = vunpack.c.l.b16 %v721
    %v799 = vunpack.c.h.b16 %v721
    %v800 = vunpack.c.l.b16 %v722
    %v801 = vunpack.c.h.b16 %v722
    %v802 = vunpack.c.l.b16 %v723
    %v803 = vunpack.c.h.b16 %v723
    %v804 = vunpack.c.l.b16 %v724
    %v805 = vunpack.c.h.b16 %v724
    %v806 = vunpack.c.l.b16 %v725
    %v807 = vunpack.c.h.b16 %v725
    %v808 = vunpack.c.l.b16 %v726
    %v809 = vunpack.c.h.b16 %v726
    %v810 = vunpack.c.l.b16 %v727
    %v811 = vunpack.c.h.b16 %v727
    %v812 = vunpack.c.l.b16 %v728
    %v813 = vunpack.c.h.b16 %v728
    %v814 = vunpack.c.l.b16 %v729
    %v815 = vunpack.c.h.b16 %v729
    %v816 = vunpack.c.l.b16 %v730
    %v817 = vunpack.c.h.b16 %v730
    %v818 = vunpack.c.l.b16 %v731
    %v819 = vunpack.c.h.b16 %v731
    %v820 = vunpack.c.l.b16 %v732
    %v821 = vunpack.c.h.b16 %v732
    %v822 = vunpack.c.l.b16 %v733
    %v823 = vunpack.c.h.b16 %v733
    %v824 = vunpack.c.l.b16 %v734
    %v825 = vunpack.c.h.b16 %v734
    %v826 = vunpack.c.l.b16 %v735
    %v827 = vunpack.c.h.b16 %v735
    %v828 = vunpack.c.l.b16 %v736
    %v829 = vunpack.c.h.b16 %v736
    %v830 = vunpack.c.l.b16 %v737
    %v831 = vunpack.c.h.b16 %v737
    %v832 = vunpack.c.l.b16 %v738
    %v833 = vunpack.c.h.b16 %v738
    %v834 = vunpack.c.l.b16 %v739
    %v835 = vunpack.c.h.b16 %v739
    %v836 = vpack.c.b16 %v774, %v772
    %v837 = vpack.c.b16 %v775, %v773
    %v838 = vpack.c.b16 %v778, %v776
    %v839 = vpack.c.b16 %v779, %v777
    %v840 = vpack.c.b16 %v782, %v780
    %v841 = vpack.c.b16 %v783, %v781
    %v842 = vpack.c.b16 %v786, %v784
    %v843 = vpack.c.b16 %v787, %v785
    %v844 = vpack.c.b16 %v790, %v788
    %v845 = vpack.c.b16 %v791, %v789
    %v846 = vpack.c.b16 %v794, %v792
    %v847 = vpack.c.b16 %v795, %v793
    %v848 = vpack.c.b16 %v798, %v796
    %v849 = vpack.c.b16 %v799, %v797
    %v850 = vpack.c.b16 %v802, %v800
    %v851 = vpack.c.b16 %v803, %v801
    %v852 = vpack.c.b16 %v806, %v804
    %v853 = vpack.c.b16 %v807, %v805
    %v854 = vpack.c.b16 %v810, %v808
    %v855 = vpack.c.b16 %v811, %v809
    %v856 = vpack.c.b16 %v814, %v812
    %v857 = vpack.c.b16 %v815, %v813
    %v858 = vpack.c.b16 %v818, %v816
    %v859 = vpack.c.b16 %v819, %v817
    %v860 = vpack.c.b16 %v822, %v820
    %v861 = vpack.c.b16 %v823, %v821
    %v862 = vpack.c.b16 %v826, %v824
    %v863 = vpack.c.b16 %v827, %v825
    %v864 = vpack.c.b16 %v830, %v828
    %v865 = vpack.c.b16 %v831, %v829
    %v866 = vpack.c.b16 %v834, %v832
    %v867 = vpack.c.b16 %v835, %v833
    %900 = vmatprep.subr.bf16.mxu0 %v837
    %901 = vmatpush1.bf16.msra.mxu0 %v836
    %902 = vmatprep.subr.bf16.mxu0 %v839
    %903 = vmatpush1.bf16.msra.mxu0 %v838
    %904 = vmatprep.subr.bf16.mxu0 %v841
    %905 = vmatpush1.bf16.msra.mxu0 %v840
    %906 = vmatprep.subr.bf16.mxu0 %v843
    %907 = vmatpush1.bf16.msra.mxu0 %v842
    %908 = vmatprep.subr.bf16.mxu0 %v845
    %909 = vmatpush1.bf16.msra.mxu0 %v844
    %910 = vmatprep.subr.bf16.mxu0 %v847
    %911 = vmatpush1.bf16.msra.mxu0 %v846
    %912 = vmatprep.subr.bf16.mxu0 %v849
    %913 = vmatpush1.bf16.msra.mxu0 %v848
    %914 = vmatprep.subr.bf16.mxu0 %v851
    %915 = vmatpush1.bf16.msra.mxu0 %v850
    %916 = vmatprep.subr.bf16.mxu0 %v853
    %917 = vmatpush1.bf16.msra.mxu0 %v852
    %918 = vmatprep.subr.bf16.mxu0 %v855
    %919 = vmatpush1.bf16.msra.mxu0 %v854
    %920 = vmatprep.subr.bf16.mxu0 %v857
    %921 = vmatpush1.bf16.msra.mxu0 %v856
    %922 = vmatprep.subr.bf16.mxu0 %v859
    %923 = vmatpush1.bf16.msra.mxu0 %v858
    %924 = vmatprep.subr.bf16.mxu0 %v861
    %925 = vmatpush1.bf16.msra.mxu0 %v860
    %926 = vmatprep.subr.bf16.mxu0 %v863
    %927 = vmatpush1.bf16.msra.mxu0 %v862
    %928 = vmatprep.subr.bf16.mxu0 %v865
    %929 = vmatpush1.bf16.msra.mxu0 %v864
    %930 = vmatprep.subr.bf16.mxu0 %v867
    %931 = vmatpush1.bf16.msra.mxu0 %v866
    %932 = vmatprep.mubr.bf16.mxu0 %v707
    %933 = vmatmul.mubr.bf16.gmra.mrb[0].mxu0 %v706
    %v934 = vpop.f32.mrb[0].mxu0
    %v935 = vadd.f32 0.0, %v934
    %v936 = vpop.f32.mrb[0].mxu0
    %v937 = vadd.f32 0.0, %v936
    %v938 = vpop.f32.mrb[0].mxu0
    %v939 = vpop.f32.mrb[0].mxu0
    %940 = vdwg.mxu0
    %v941 = vpack.c.bf16 %v935, %v935
    %v942 = vpack.c.bf16 %v937, %v937
    %v943 = vlaneseq
    %v944 = vshrl.u32 %v943, 7
    %v945 = vsub.s32 1, %v944
    %v946 = vrot.slane %v444, %v945
    %v947 = vlaneseq
    %v948 = vshrl.u32 %v947, 7
    %v949 = vsub.s32 1, %v948
    %v950 = vrot.slane %v451, %v949
    %v951 = vadd.bf16 %v941, %v946
    %v952 = vadd.bf16 %v942, %v950
    %v953 = vmax.bf16 %v951, 0
    %v954 = vmax.bf16 %v952, 0
    %v955 = vld [vmem:[#allocation11] sm:$0xff]
    %v956 = vld [vmem:[#allocation11 + $0x8] sm:$0xff]
    %v957 = vld [vmem:[#allocation11 + $0x10] sm:$0xff]
    %v958 = vld [vmem:[#allocation11 + $0x18] sm:$0xff]
    %v959 = vld [vmem:[#allocation11 + $0x20] sm:$0xff]
    %v960 = vld [vmem:[#allocation11 + $0x28] sm:$0xff]
    %v961 = vld [vmem:[#allocation11 + $0x30] sm:$0xff]
    %v962 = vld [vmem:[#allocation11 + $0x38] sm:$0xff]
    %v963 = vld [vmem:[#allocation11 + $0x40] sm:$0xff]
    %v964 = vld [vmem:[#allocation11 + $0x48] sm:$0xff]
    %v965 = vld [vmem:[#allocation11 + $0x50] sm:$0xff]
    %v966 = vld [vmem:[#allocation11 + $0x58] sm:$0xff]
    %v967 = vld [vmem:[#allocation11 + $0x60] sm:$0xff]
    %v968 = vld [vmem:[#allocation11 + $0x68] sm:$0xff]
    %v969 = vld [vmem:[#allocation11 + $0x70] sm:$0xff]
    %v970 = vld [vmem:[#allocation11 + $0x78] sm:$0xff]
    %v971 = vld [vmem:[#allocation11 + $0x80] sm:$0xff]
    %v972 = vld [vmem:[#allocation11 + $0x88] sm:$0xff]
    %v973 = vld [vmem:[#allocation11 + $0x90] sm:$0xff]
    %v974 = vld [vmem:[#allocation11 + $0x98] sm:$0xff]
    %v975 = vld [vmem:[#allocation11 + $0xa0] sm:$0xff]
    %v976 = vld [vmem:[#allocation11 + $0xa8] sm:$0xff]
    %v977 = vld [vmem:[#allocation11 + $0xb0] sm:$0xff]
    %v978 = vld [vmem:[#allocation11 + $0xb8] sm:$0xff]
    %v979 = vld [vmem:[#allocation11 + $0xc0] sm:$0xff]
    %v980 = vld [vmem:[#allocation11 + $0xc8] sm:$0xff]
    %v981 = vld [vmem:[#allocation11 + $0xd0] sm:$0xff]
    %v982 = vld [vmem:[#allocation11 + $0xd8] sm:$0xff]
    %v983 = vld [vmem:[#allocation11 + $0xe0] sm:$0xff]
    %v984 = vld [vmem:[#allocation11 + $0xe8] sm:$0xff]
    %v985 = vld [vmem:[#allocation11 + $0xf0] sm:$0xff]
    %v986 = vld [vmem:[#allocation11 + $0xf8] sm:$0xff]
    %v1019 = vunpack.c.l.b16 %v955
    %v1020 = vunpack.c.h.b16 %v955
    %v1021 = vunpack.c.l.b16 %v956
    %v1022 = vunpack.c.h.b16 %v956
    %v1023 = vunpack.c.l.b16 %v957
    %v1024 = vunpack.c.h.b16 %v957
    %v1025 = vunpack.c.l.b16 %v958
    %v1026 = vunpack.c.h.b16 %v958
    %v1027 = vunpack.c.l.b16 %v959
    %v1028 = vunpack.c.h.b16 %v959
    %v1029 = vunpack.c.l.b16 %v960
    %v1030 = vunpack.c.h.b16 %v960
    %v1031 = vunpack.c.l.b16 %v961
    %v1032 = vunpack.c.h.b16 %v961
    %v1033 = vunpack.c.l.b16 %v962
    %v1034 = vunpack.c.h.b16 %v962
    %v1035 = vunpack.c.l.b16 %v963
    %v1036 = vunpack.c.h.b16 %v963
    %v1037 = vunpack.c.l.b16 %v964
    %v1038 = vunpack.c.h.b16 %v964
    %v1039 = vunpack.c.l.b16 %v965
    %v1040 = vunpack.c.h.b16 %v965
    %v1041 = vunpack.c.l.b16 %v966
    %v1042 = vunpack.c.h.b16 %v966
    %v1043 = vunpack.c.l.b16 %v967
    %v1044 = vunpack.c.h.b16 %v967
    %v1045 = vunpack.c.l.b16 %v968
    %v1046 = vunpack.c.h.b16 %v968
    %v1047 = vunpack.c.l.b16 %v969
    %v1048 = vunpack.c.h.b16 %v969
    %v1049 = vunpack.c.l.b16 %v970
    %v1050 = vunpack.c.h.b16 %v970
    %v1051 = vunpack.c.l.b16 %v971
    %v1052 = vunpack.c.h.b16 %v971
    %v1053 = vunpack.c.l.b16 %v972
    %v1054 = vunpack.c.h.b16 %v972
    %v1055 = vunpack.c.l.b16 %v973
    %v1056 = vunpack.c.h.b16 %v973
    %v1057 = vunpack.c.l.b16 %v974
    %v1058 = vunpack.c.h.b16 %v974
    %v1059 = vunpack.c.l.b16 %v975
    %v1060 = vunpack.c.h.b16 %v975
    %v1061 = vunpack.c.l.b16 %v976
    %v1062 = vunpack.c.h.b16 %v976
    %v1063 = vunpack.c.l.b16 %v977
    %v1064 = vunpack.c.h.b16 %v977
    %v1065 = vunpack.c.l.b16 %v978
    %v1066 = vunpack.c.h.b16 %v978
    %v1067 = vunpack.c.l.b16 %v979
    %v1068 = vunpack.c.h.b16 %v979
    %v1069 = vunpack.c.l.b16 %v980
    %v1070 = vunpack.c.h.b16 %v980
    %v1071 = vunpack.c.l.b16 %v981
    %v1072 = vunpack.c.h.b16 %v981
    %v1073 = vunpack.c.l.b16 %v982
    %v1074 = vunpack.c.h.b16 %v982
    %v1075 = vunpack.c.l.b16 %v983
    %v1076 = vunpack.c.h.b16 %v983
    %v1077 = vunpack.c.l.b16 %v984
    %v1078 = vunpack.c.h.b16 %v984
    %v1079 = vunpack.c.l.b16 %v985
    %v1080 = vunpack.c.h.b16 %v985
    %v1081 = vunpack.c.l.b16 %v986
    %v1082 = vunpack.c.h.b16 %v986
    %v1083 = vpack.c.b16 %v1021, %v1019
    %v1084 = vpack.c.b16 %v1022, %v1020
    %v1085 = vpack.c.b16 %v1025, %v1023
    %v1086 = vpack.c.b16 %v1026, %v1024
    %v1087 = vpack.c.b16 %v1029, %v1027
    %v1088 = vpack.c.b16 %v1030, %v1028
    %v1089 = vpack.c.b16 %v1033, %v1031
    %v1090 = vpack.c.b16 %v1034, %v1032
    %v1091 = vpack.c.b16 %v1037, %v1035
    %v1092 = vpack.c.b16 %v1038, %v1036
    %v1093 = vpack.c.b16 %v1041, %v1039
    %v1094 = vpack.c.b16 %v1042, %v1040
    %v1095 = vpack.c.b16 %v1045, %v1043
    %v1096 = vpack.c.b16 %v1046, %v1044
    %v1097 = vpack.c.b16 %v1049, %v1047
    %v1098 = vpack.c.b16 %v1050, %v1048
    %v1099 = vpack.c.b16 %v1053, %v1051
    %v1100 = vpack.c.b16 %v1054, %v1052
    %v1101 = vpack.c.b16 %v1057, %v1055
    %v1102 = vpack.c.b16 %v1058, %v1056
    %v1103 = vpack.c.b16 %v1061, %v1059
    %v1104 = vpack.c.b16 %v1062, %v1060
    %v1105 = vpack.c.b16 %v1065, %v1063
    %v1106 = vpack.c.b16 %v1066, %v1064
    %v1107 = vpack.c.b16 %v1069, %v1067
    %v1108 = vpack.c.b16 %v1070, %v1068
    %v1109 = vpack.c.b16 %v1073, %v1071
    %v1110 = vpack.c.b16 %v1074, %v1072
    %v1111 = vpack.c.b16 %v1077, %v1075
    %v1112 = vpack.c.b16 %v1078, %v1076
    %v1113 = vpack.c.b16 %v1081, %v1079
    %v1114 = vpack.c.b16 %v1082, %v1080
    %1147 = vmatprep.subr.bf16.mxu0 %v1084
    %1148 = vmatpush1.bf16.msra.mxu0 %v1083
    %1149 = vmatprep.subr.bf16.mxu0 %v1086
    %1150 = vmatpush1.bf16.msra.mxu0 %v1085
    %1151 = vmatprep.subr.bf16.mxu0 %v1088
    %1152 = vmatpush1.bf16.msra.mxu0 %v1087
    %1153 = vmatprep.subr.bf16.mxu0 %v1090
    %1154 = vmatpush1.bf16.msra.mxu0 %v1089
    %1155 = vmatprep.subr.bf16.mxu0 %v1092
    %1156 = vmatpush1.bf16.msra.mxu0 %v1091
    %1157 = vmatprep.subr.bf16.mxu0 %v1094
    %1158 = vmatpush1.bf16.msra.mxu0 %v1093
    %1159 = vmatprep.subr.bf16.mxu0 %v1096
    %1160 = vmatpush1.bf16.msra.mxu0 %v1095
    %1161 = vmatprep.subr.bf16.mxu0 %v1098
    %1162 = vmatpush1.bf16.msra.mxu0 %v1097
    %1163 = vmatprep.subr.bf16.mxu0 %v1100
    %1164 = vmatpush1.bf16.msra.mxu0 %v1099
    %1165 = vmatprep.subr.bf16.mxu0 %v1102
    %1166 = vmatpush1.bf16.msra.mxu0 %v1101
    %1167 = vmatprep.subr.bf16.mxu0 %v1104
    %1168 = vmatpush1.bf16.msra.mxu0 %v1103
    %1169 = vmatprep.subr.bf16.mxu0 %v1106
    %1170 = vmatpush1.bf16.msra.mxu0 %v1105
    %1171 = vmatprep.subr.bf16.mxu0 %v1108
    %1172 = vmatpush1.bf16.msra.mxu0 %v1107
    %1173 = vmatprep.subr.bf16.mxu0 %v1110
    %1174 = vmatpush1.bf16.msra.mxu0 %v1109
    %1175 = vmatprep.subr.bf16.mxu0 %v1112
    %1176 = vmatpush1.bf16.msra.mxu0 %v1111
    %1177 = vmatprep.subr.bf16.mxu0 %v1114
    %1178 = vmatpush1.bf16.msra.mxu0 %v1113
    %1179 = vmatprep.mubr.bf16.mxu0 %v954
    %1180 = vmatmul.mubr.bf16.gmra.mrb[0].mxu0 %v953
    %v1181 = vpop.f32.mrb[0].mxu0
    %v1182 = vadd.f32 0.0, %v1181
    %v1183 = vpop.f32.mrb[0].mxu0
    %v1184 = vadd.f32 0.0, %v1183
    %v1185 = vpop.f32.mrb[0].mxu0
    %v1186 = vpop.f32.mrb[0].mxu0
    %1187 = vdwg.mxu0
    %v1188 = vpack.c.bf16 %v1182, %v1182
    %v1189 = vpack.c.bf16 %v1184, %v1184
    %v1190 = vlaneseq
    %v1191 = vshrl.u32 %v1190, 7
    %v1192 = vsub.s32 2, %v1191
    %v1193 = vrot.slane %v191, %v1192
    %v1194 = vlaneseq
    %v1195 = vshrl.u32 %v1194, 7
    %v1196 = vsub.s32 2, %v1195
    %v1197 = vrot.slane %v198, %v1196
    %v1198 = vadd.bf16 %v1188, %v1193
    %v1199 = vadd.bf16 %v1189, %v1197
    %v1200 = vmax.bf16 %v1198, 0
    %v1201 = vmax.bf16 %v1199, 0
    %v1202 = vlaneseq
    %v1203 = vshrl.u32 %v1202, 7
    %v1204 = vsub.s32 2, %v1203
    %v1205 = vrot.slane %v444, %v1204
    %v1206 = vlaneseq
    %v1207 = vshrl.u32 %v1206, 7
    %v1208 = vsub.s32 2, %v1207
    %v1209 = vrot.slane %v451, %v1208
    %v1210 = vmul.bf16 %v1200, %v1205
    %v1211 = vmul.bf16 %v1201, %v1209
    %v1212 = vunpack.c.l.bf16 %v1210
    %v1213 = vunpack.c.l.bf16 %v1211
    %v1214 = vadd.f32 %v1212, %v1213
    %1215 = vadd.xlane.f32.xlu0 %v1214
    %v1216 = vpop.xlane.xlu0 %1215
    %v1217 = vld [vmem:[#allocation2] sm:$0x1]
    %v1219 = vlaneseq
    %v1220 = vshrl.u32 %v1219, 7
    %v1221 = vsub.s32 0, %v1220
    %v1222 = vrot.slane %v1217, %v1221
    %v1224 = vadd.f32 %v1216, %v1222
    %v1225 = vxor.u32 %v1224, 2147483648
    %v1226 = vmul.f32 %v1225, 1.442695
    %v1227 = vpow.pop %v1226
    %v1228 = vadd.f32 %v1227, 1.0
    %v1229 = vrcp.pop %v1228
    %v1230 = vmul.f32 1.0, %v1229
    %vm1231 = vcmask 7168
    %1232 = vst.msk [vmem:[%s8] sm:$0xff] %vm1231, %v1230
    // Predicated region
    $region58: #{tpu_custom_call.1} parent=1 // pred_check
      _
    $region59: #{tpu_custom_call.1} parent=1 // pred_check_branch
      %1234 = sbr.rel (0) target = $region61
    $region60: #{tpu_custom_call.1} parent=1 // pred_region
      _
    $region61: #{tpu_custom_call.1} parent=1 // pred_fallthru
      _
    // Predicated region
    $region62: #{tpu_custom_call.1} parent=1 // pred_check
      _
    $region63: #{tpu_custom_call.1} parent=1 // pred_check_branch
      %1236 = sbr.rel (0) target = $region65
    $region64: #{tpu_custom_call.1} parent=1 // pred_region
      _
    $region65: #{tpu_custom_call.1} parent=1 // pred_fallthru
      _
    %1237 = vsyncpa [#allocation4], 1
    %1238 = vsyncpa [#allocation6], 1
    %1239 = vsyncpa [#allocation9], 1
    %1240 = vsyncpa [#allocation12], 1

</llo_original>
